<compile_context>
chip_gen: v7x
topology: tpu7x:2x2x1
jax: 0.10.0
libtpu: 0.0.40
codegen_flags: <defaults>
</compile_context>

<pallas_src>
import jax
import jax.numpy as jnp
from jax.experimental import pallas as pl
from jax.experimental.pallas import tpu as pltpu

H = 128


def _round_up(n, m):
    return ((n + m - 1) // m) * m


def _round_down(n, m):
    return (n // m) * m


def mlp_kernel(x_ref, w1_ref, b1_ref, w2_ref, b2_ref, w3_ref, b3_ref, w4_ref,
               o_ref):
    # fc1 (in=1): rank-1 broadcast on the VPU. x row (1, tm), w1/b1 columns (H, 1).
    x = x_ref[...].astype(jnp.float32)                                  # (1, tm)
    h = w1_ref[...].astype(jnp.float32) * x + b1_ref[...].astype(jnp.float32)
    h = jnp.maximum(h, 0.0)                                             # (H, tm)

    # fc2 / fc3: real (H,H) @ (H,tm) MXU matmuls, f32 accumulation.
    # Bias-add + ReLU stay f32 on the VPU (v5e has no bf16 VALU).
    h = jnp.dot(w2_ref[...], h.astype(w2_ref.dtype),
                preferred_element_type=jnp.float32)
    h = jnp.maximum(h + b2_ref[...].astype(jnp.float32), 0.0)

    h = jnp.dot(w3_ref[...], h.astype(w3_ref.dtype),
                preferred_element_type=jnp.float32)
    h = jnp.maximum(h + b3_ref[...].astype(jnp.float32), 0.0)

    # fc4 (out=1, no bias): VPU multiply + sublane (axis 0) reduction.
    # Output stays lane-dense: (1, tm).
    y = jnp.sum(h * w4_ref[...].astype(jnp.float32), axis=0, keepdims=True)
    o_ref[...] = y.astype(o_ref.dtype)                                  # (1, tm)


def mlp_forward(x, params, *, tm=2048, weight_dtype=jnp.bfloat16):
    """x: (B, 1) float32. params: PyTorch-layout dict (see init_params).

    weight_dtype: dtype for fc2/fc3 weights on the MXU (default bf16, full MXU
    rate; pass None for an all-f32 path with ~1e-5 accuracy).
    """
    B = x.shape[0]
    assert x.shape == (B, 1)

    # Free layout flips: batch goes to the lane dimension.
    x_row = x.reshape(1, B)

    w1 = params["w1"]                 # (H, 1)   PyTorch (out, in)
    b1 = params["b1"].reshape(H, 1)
    w2 = params["w2"]                 # (H, H)   PyTorch (out, in)
    b2 = params["b2"].reshape(H, 1)
    w3 = params["w3"]                 # (H, H)
    b3 = params["b3"].reshape(H, 1)
    w4 = params["w4"].reshape(H, 1)   # (1, H) -> column

    if weight_dtype is not None:
        w2 = w2.astype(weight_dtype)
        w3 = w3.astype(weight_dtype)

    # Batch (lane) tile: multiple of 128, big enough to amortize per-step
    # overhead, but keep >= 2 grid steps when B is large (v7x has 2 TCs).
    if B <= 128:
        tm_eff = B                       # single block == full array, no padding
    else:
        tm_eff = max(128, min(_round_down(tm, 128), _round_up(B, 128)))
        if B >= 2 * 128 and pl.cdiv(B, tm_eff) < 2:
            tm_eff = _round_up(pl.cdiv(B, 2), 128)
    grid = (pl.cdiv(B, tm_eff),)

    full = lambda shape: pl.BlockSpec(shape, lambda i: (0, 0))

    # Advisory cost hint: two (H,H)@(H,tm) matmuls per tile + rank-1 layers.
    weight_bytes = 2 * H * H * jnp.dtype(w2.dtype).itemsize + 5 * H * 4
    cost = pl.CostEstimate(
        flops=int(B) * (2 * H * H * 2 + 4 * H),
        transcendentals=0,
        bytes_accessed=int(weight_bytes + B * 2 * 4),
    )

    y_row = pl.pallas_call(
        mlp_kernel,
        out_shape=jax.ShapeDtypeStruct((1, B), x.dtype),
        grid_spec=pltpu.PrefetchScalarGridSpec(
            num_scalar_prefetch=0,
            grid=grid,
            in_specs=[
                pl.BlockSpec((1, tm_eff), lambda i: (0, i)),   # x row tile
                full((H, 1)),                                  # w1
                full((H, 1)),                                  # b1
                full((H, H)),                                  # w2
                full((H, 1)),                                  # b2
                full((H, H)),                                  # w3
                full((H, 1)),                                  # b3
                full((H, 1)),                                  # w4
            ],
            out_specs=pl.BlockSpec((1, tm_eff), lambda i: (0, i)),
        ),
        compiler_params=pltpu.CompilerParams(
            dimension_semantics=("parallel",)),
        cost_estimate=cost,
    )(x_row, w1, b1, w2, b2, w3, b3, w4)

    return y_row.reshape(B, 1)


def init_params(key):
    """PyTorch-layout params with nn.Linear default init U[-1/sqrt(fan_in), +]."""
    ks = jax.random.split(key, 7)

    def u(k, shape, fan_in):
        bound = 1.0 / jnp.sqrt(jnp.float32(fan_in))
        return jax.random.uniform(k, shape, jnp.float32, -bound, bound)

    return {
        "w1": u(ks[0], (H, 1), 1), "b1": u(ks[1], (H,), 1),
        "w2": u(ks[2], (H, H), H), "b2": u(ks[3], (H,), H),
        "w3": u(ks[4], (H, H), H), "b3": u(ks[5], (H,), H),
        "w4": u(ks[6], (1, H), H),                       # fc4 bias=False
    }


def reference_forward(x, p):
    # Pure-JAX reference in PyTorch orientation: y = W @ h + b per layer.
    h = jnp.maximum(x @ p["w1"].T + p["b1"], 0.0)
    h = jnp.maximum(h @ p["w2"].T + p["b2"], 0.0)
    h = jnp.maximum(h @ p["w3"].T + p["b3"], 0.0)
    return h @ p["w4"].T


if __name__ == "__main__":
    key = jax.random.PRNGKey(0)
    kp, kx1, kx2 = jax.random.split(key, 3)
    params = init_params(kp)

    # Small batch, all-f32 path: tight correctness vs the reference.
    B = 8
    x = jax.random.uniform(kx1, (B, 1), jnp.float32, -3.14159, 3.14159)
    y = jax.block_until_ready(mlp_forward(x, params, weight_dtype=None))
    y_ref = reference_forward(x, params)
    assert y.shape == (B, 1)
    assert jnp.allclose(y, y_ref, atol=1e-4, rtol=1e-4)

    # Larger, non-multiple-of-128 batch on the default bf16-weight path:
    # exercises >=2 grid steps, the ragged last block (no padding copy),
    # and the lane-dense output path.
    B2 = 1000
    x2 = jax.random.uniform(kx2, (B2, 1), jnp.float32, -3.14159, 3.14159)
    y2 = jax.block_until_ready(mlp_forward(x2, params))
    y2_ref = reference_forward(x2, params)
    assert y2.shape == (B2, 1)
    assert bool(jnp.all(jnp.isfinite(y2)))
    assert jnp.allclose(y2, y2_ref, atol=3e-2, rtol=3e-2)

    print("KERNEL_OK")
</pallas_src>

<mosaic_0001>
module attributes {stable_mosaic.version = 11 : i64} {
  func.func @mlp_kernel(%arg0: i32, %arg1: memref<1x8xf32, #tpu.memory_space<vmem>>, %arg2: memref<128x1xf32, #tpu.memory_space<vmem>>, %arg3: memref<128x1xf32, #tpu.memory_space<vmem>>, %arg4: memref<128x128xf32, #tpu.memory_space<vmem>>, %arg5: memref<128x1xf32, #tpu.memory_space<vmem>>, %arg6: memref<128x128xf32, #tpu.memory_space<vmem>>, %arg7: memref<128x1xf32, #tpu.memory_space<vmem>>, %arg8: memref<128x1xf32, #tpu.memory_space<vmem>>, %arg9: memref<1x8xf32, #tpu.memory_space<vmem>>) attributes {dimension_semantics = [#tpu.dimension_semantics<parallel>], iteration_bounds = array<i64: 1>, scalar_prefetch = 0 : i64, scratch_operands = 0 : i64, tpu.core_type = #tpu.core_type<tc>, window_params = [{transform_indices = @transform_0, window_bounds = array<i64: 1, 8>}, {pipeline_mode = #tpu.pipeline_mode<synchronous>, transform_indices = @transform_1, window_bounds = array<i64: 128, 1>}, {pipeline_mode = #tpu.pipeline_mode<synchronous>, transform_indices = @transform_2, window_bounds = array<i64: 128, 1>}, {pipeline_mode = #tpu.pipeline_mode<synchronous>, transform_indices = @transform_3, window_bounds = array<i64: 128, 128>}, {pipeline_mode = #tpu.pipeline_mode<synchronous>, transform_indices = @transform_4, window_bounds = array<i64: 128, 1>}, {pipeline_mode = #tpu.pipeline_mode<synchronous>, transform_indices = @transform_5, window_bounds = array<i64: 128, 128>}, {pipeline_mode = #tpu.pipeline_mode<synchronous>, transform_indices = @transform_6, window_bounds = array<i64: 128, 1>}, {pipeline_mode = #tpu.pipeline_mode<synchronous>, transform_indices = @transform_7, window_bounds = array<i64: 128, 1>}, {transform_indices = @transform_8, window_bounds = array<i64: 1, 8>}]} {
    %c0 = arith.constant 0 : index
    %c0_0 = arith.constant 0 : index
    %0 = vector.load %arg1[%c0, %c0_0] : memref<1x8xf32, #tpu.memory_space<vmem>>, vector<1x8xf32>
    %c0_1 = arith.constant 0 : index
    %c0_2 = arith.constant 0 : index
    %1 = vector.load %arg2[%c0_1, %c0_2] : memref<128x1xf32, #tpu.memory_space<vmem>>, vector<128x1xf32>
    %2 = vector.broadcast %1 : vector<128x1xf32> to vector<128x8xf32>
    %3 = vector.broadcast %0 : vector<1x8xf32> to vector<128x8xf32>
    %4 = arith.mulf %2, %3 : vector<128x8xf32>
    %c0_3 = arith.constant 0 : index
    %c0_4 = arith.constant 0 : index
    %5 = vector.load %arg3[%c0_3, %c0_4] : memref<128x1xf32, #tpu.memory_space<vmem>>, vector<128x1xf32>
    %6 = vector.broadcast %5 : vector<128x1xf32> to vector<128x8xf32>
    %7 = arith.addf %4, %6 : vector<128x8xf32>
    %cst = arith.constant 0.000000e+00 : f32
    %8 = vector.broadcast %cst : f32 to vector<128x8xf32>
    %9 = arith.maximumf %7, %8 : vector<128x8xf32>
    %c0_5 = arith.constant 0 : index
    %c0_6 = arith.constant 0 : index
    %10 = vector.load %arg4[%c0_5, %c0_6] : memref<128x128xf32, #tpu.memory_space<vmem>>, vector<128x128xf32>
    %cst_7 = arith.constant dense<0.000000e+00> : vector<128x8xf32>
    %11 = tpu.matmul %10, %9, %cst_7 {dimension_numbers = #tpu.dot_dimension_numbers<[1], [0], [0], [1], [0, 0, 1, 1], [], []>} : vector<128x128xf32>, vector<128x8xf32>, vector<128x8xf32> -> vector<128x8xf32>
    %c0_8 = arith.constant 0 : index
    %c0_9 = arith.constant 0 : index
    %12 = vector.load %arg5[%c0_8, %c0_9] : memref<128x1xf32, #tpu.memory_space<vmem>>, vector<128x1xf32>
    %13 = vector.broadcast %12 : vector<128x1xf32> to vector<128x8xf32>
    %14 = arith.addf %11, %13 : vector<128x8xf32>
    %cst_10 = arith.constant 0.000000e+00 : f32
    %15 = vector.broadcast %cst_10 : f32 to vector<128x8xf32>
    %16 = arith.maximumf %14, %15 : vector<128x8xf32>
    %c0_11 = arith.constant 0 : index
    %c0_12 = arith.constant 0 : index
    %17 = vector.load %arg6[%c0_11, %c0_12] : memref<128x128xf32, #tpu.memory_space<vmem>>, vector<128x128xf32>
    %cst_13 = arith.constant dense<0.000000e+00> : vector<128x8xf32>
    %18 = tpu.matmul %17, %16, %cst_13 {dimension_numbers = #tpu.dot_dimension_numbers<[1], [0], [0], [1], [0, 0, 1, 1], [], []>} : vector<128x128xf32>, vector<128x8xf32>, vector<128x8xf32> -> vector<128x8xf32>
    %c0_14 = arith.constant 0 : index
    %c0_15 = arith.constant 0 : index
    %19 = vector.load %arg7[%c0_14, %c0_15] : memref<128x1xf32, #tpu.memory_space<vmem>>, vector<128x1xf32>
    %20 = vector.broadcast %19 : vector<128x1xf32> to vector<128x8xf32>
    %21 = arith.addf %18, %20 : vector<128x8xf32>
    %cst_16 = arith.constant 0.000000e+00 : f32
    %22 = vector.broadcast %cst_16 : f32 to vector<128x8xf32>
    %23 = arith.maximumf %21, %22 : vector<128x8xf32>
    %c0_17 = arith.constant 0 : index
    %c0_18 = arith.constant 0 : index
    %24 = vector.load %arg8[%c0_17, %c0_18] : memref<128x1xf32, #tpu.memory_space<vmem>>, vector<128x1xf32>
    %25 = vector.broadcast %24 : vector<128x1xf32> to vector<128x8xf32>
    %26 = arith.mulf %23, %25 : vector<128x8xf32>
    %cst_19 = arith.constant dense<0.000000e+00> : vector<8xf32>
    %27 = vector.multi_reduction <add>, %26, %cst_19 [0] : vector<128x8xf32> to vector<8xf32>
    %28 = vector.shape_cast %27 : vector<8xf32> to vector<1x8xf32>
    %c0_20 = arith.constant 0 : index
    %c0_21 = arith.constant 0 : index
    %29 = vector.load %arg9[%c0_20, %c0_21] : memref<1x8xf32, #tpu.memory_space<vmem>>, vector<1x8xf32>
    tpu.vector_store %arg9[%c0_20, %c0_21], %28 {strides = array<i32>} : memref<1x8xf32, #tpu.memory_space<vmem>>, vector<1x8xf32>,
    return
  }
  func.func @transform_0(%arg0: i32) -> (i32, i32) {
    %c0_i32 = arith.constant 0 : i32
    %c0_i32_0 = arith.constant 0 : i32
    return %c0_i32, %arg0 : i32, i32
  }
  func.func @transform_1(%arg0: i32) -> (i32, i32) {
    %c0_i32 = arith.constant 0 : i32
    %c0_i32_0 = arith.constant 0 : i32
    %c0_i32_1 = arith.constant 0 : i32
    return %c0_i32, %c0_i32_0 : i32, i32
  }
  func.func @transform_2(%arg0: i32) -> (i32, i32) {
    %c0_i32 = arith.constant 0 : i32
    %c0_i32_0 = arith.constant 0 : i32
    %c0_i32_1 = arith.constant 0 : i32
    return %c0_i32, %c0_i32_0 : i32, i32
  }
  func.func @transform_3(%arg0: i32) -> (i32, i32) {
    %c0_i32 = arith.constant 0 : i32
    %c0_i32_0 = arith.constant 0 : i32
    %c0_i32_1 = arith.constant 0 : i32
    return %c0_i32, %c0_i32_0 : i32, i32
  }
  func.func @transform_4(%arg0: i32) -> (i32, i32) {
    %c0_i32 = arith.constant 0 : i32
    %c0_i32_0 = arith.constant 0 : i32
    %c0_i32_1 = arith.constant 0 : i32
    return %c0_i32, %c0_i32_0 : i32, i32
  }
  func.func @transform_5(%arg0: i32) -> (i32, i32) {
    %c0_i32 = arith.constant 0 : i32
    %c0_i32_0 = arith.constant 0 : i32
    %c0_i32_1 = arith.constant 0 : i32
    return %c0_i32, %c0_i32_0 : i32, i32
  }
  func.func @transform_6(%arg0: i32) -> (i32, i32) {
    %c0_i32 = arith.constant 0 : i32
    %c0_i32_0 = arith.constant 0 : i32
    %c0_i32_1 = arith.constant 0 : i32
    return %c0_i32, %c0_i32_0 : i32, i32
  }
  func.func @transform_7(%arg0: i32) -> (i32, i32) {
    %c0_i32 = arith.constant 0 : i32
    %c0_i32_0 = arith.constant 0 : i32
    %c0_i32_1 = arith.constant 0 : i32
    return %c0_i32, %c0_i32_0 : i32, i32
  }
  func.func @transform_8(%arg0: i32) -> (i32, i32) {
    %c0_i32 = arith.constant 0 : i32
    %c0_i32_0 = arith.constant 0 : i32
    return %c0_i32, %arg0 : i32, i32
  }
}

</mosaic_0001>

<llo_original>
// kernel: tpu_custom_call.1
$region0: #{tpu_custom_call.1}
  #allocation0 [shape = 'u32[]', space=smem, size = 0x4, offset = 0x4, fixed_abs, tag = 'smem constant byte address 0x4 - core index']
  #allocation1 [shape = 'u32[144,128]{1,0:T(1,128)}', space=vmem, size = 0x12000, scoped, tag = 'internal scratch']
  %s0 = inlined_call_operand.vmem [shape: f32[1,8], index: 0, kind: input, shape index: {}]
  %s1 = inlined_call_operand.vmem [shape: f32[128,1], index: 1, kind: input, shape index: {}]
  %s2 = inlined_call_operand.vmem [shape: f32[128,1], index: 2, kind: input, shape index: {}]
  %s3 = inlined_call_operand.vmem [shape: f32[128,128], index: 3, kind: input, shape index: {}]
  %s4 = inlined_call_operand.vmem [shape: f32[128,1], index: 4, kind: input, shape index: {}]
  %s5 = inlined_call_operand.vmem [shape: f32[128,128], index: 5, kind: input, shape index: {}]
  %s6 = inlined_call_operand.vmem [shape: f32[128,1], index: 6, kind: input, shape index: {}]
  %s7 = inlined_call_operand.vmem [shape: f32[128,1], index: 7, kind: input, shape index: {}]
  %s8 = inlined_call_operand.hbm [shape: f32[1,8], index: 8, kind: output, shape index: {}]
  %s9 = sld [smem:[#allocation0]]
  $region42: #{tpu_custom_call.1} parent=0
    _
  %s11 = ssub.s32 1, %s9
  %s12 = scalar_select 0, %s11, %s9
  $region1: #{tpu_custom_call.1} parent=0
    #allocation2 [shape = 'u8[512]{0}', space=vmem, size = 0x400, scoped, tag = 'output window, operand 0, single buffered']
    #allocation3 [shape = 's32[1]{0}', space=sflag, size = 0x4, scoped, tag = 'scoped memory for tpu_custom_call.1']
    %13 = vsyncpa [#allocation3], 0
    // Predicated region
    $region2: #{tpu_custom_call.1} parent=1 // pred_check
      _
    $region3: #{tpu_custom_call.1} parent=1 // pred_check_branch
      %15 = sbr.rel (0) target = $region5
    $region4: #{tpu_custom_call.1} parent=1 // pred_region
      _
    $region5: #{tpu_custom_call.1} parent=1 // pred_fallthru
      _
    // Predicated region
    $region6: #{tpu_custom_call.1} parent=1 // pred_check
      _
    $region7: #{tpu_custom_call.1} parent=1 // pred_check_branch
      %17 = sbr.rel (0) target = $region9
    $region8: #{tpu_custom_call.1} parent=1 // pred_region
      _
    $region9: #{tpu_custom_call.1} parent=1 // pred_fallthru
      _
    // Predicated region
    $region10: #{tpu_custom_call.1} parent=1 // pred_check
      _
    $region11: #{tpu_custom_call.1} parent=1 // pred_check_branch
      %19 = sbr.rel (0) target = $region13
    $region12: #{tpu_custom_call.1} parent=1 // pred_region
      _
    $region13: #{tpu_custom_call.1} parent=1 // pred_fallthru
      _
    // Predicated region
    $region14: #{tpu_custom_call.1} parent=1 // pred_check
      _
    $region15: #{tpu_custom_call.1} parent=1 // pred_check_branch
      %21 = sbr.rel (0) target = $region17
    $region16: #{tpu_custom_call.1} parent=1 // pred_region
      _
    $region17: #{tpu_custom_call.1} parent=1 // pred_fallthru
      _
    // Predicated region
    $region18: #{tpu_custom_call.1} parent=1 // pred_check
      _
    $region19: #{tpu_custom_call.1} parent=1 // pred_check_branch
      %23 = sbr.rel (0) target = $region21
    $region20: #{tpu_custom_call.1} parent=1 // pred_region
      _
    $region21: #{tpu_custom_call.1} parent=1 // pred_fallthru
      _
    // Predicated region
    $region22: #{tpu_custom_call.1} parent=1 // pred_check
      _
    $region23: #{tpu_custom_call.1} parent=1 // pred_check_branch
      %25 = sbr.rel (0) target = $region25
    $region24: #{tpu_custom_call.1} parent=1 // pred_region
      _
    $region25: #{tpu_custom_call.1} parent=1 // pred_fallthru
      _
    // Predicated region
    $region26: #{tpu_custom_call.1} parent=1 // pred_check
      _
    $region27: #{tpu_custom_call.1} parent=1 // pred_check_branch
      %27 = sbr.rel (0) target = $region29
    $region28: #{tpu_custom_call.1} parent=1 // pred_region
      _
    $region29: #{tpu_custom_call.1} parent=1 // pred_fallthru
      _
    // Predicated region
    $region30: #{tpu_custom_call.1} parent=1 // pred_check
      _
    $region31: #{tpu_custom_call.1} parent=1 // pred_check_branch
      %29 = sbr.rel (0) target = $region33
    $region32: #{tpu_custom_call.1} parent=1 // pred_region
      _
    $region33: #{tpu_custom_call.1} parent=1 // pred_fallthru
      _
    %v30 = vld [vmem:[%s0] sm:$0x1]
    %v31 = vld [vmem:[%s1] sm:$0xff]
    %v32 = vld [vmem:[%s1 + $0x8] sm:$0xff]
    %v33 = vld [vmem:[%s1 + $0x10] sm:$0xff]
    %v34 = vld [vmem:[%s1 + $0x18] sm:$0xff]
    %v35 = vld [vmem:[%s1 + $0x20] sm:$0xff]
    %v36 = vld [vmem:[%s1 + $0x28] sm:$0xff]
    %v37 = vld [vmem:[%s1 + $0x30] sm:$0xff]
    %v38 = vld [vmem:[%s1 + $0x38] sm:$0xff]
    %v39 = vld [vmem:[%s1 + $0x40] sm:$0xff]
    %v40 = vld [vmem:[%s1 + $0x48] sm:$0xff]
    %v41 = vld [vmem:[%s1 + $0x50] sm:$0xff]
    %v42 = vld [vmem:[%s1 + $0x58] sm:$0xff]
    %v43 = vld [vmem:[%s1 + $0x60] sm:$0xff]
    %v44 = vld [vmem:[%s1 + $0x68] sm:$0xff]
    %v45 = vld [vmem:[%s1 + $0x70] sm:$0xff]
    %v46 = vld [vmem:[%s1 + $0x78] sm:$0xff]
    %48 = vset.pattern.permute.xlu0 0
    %49 = vperm.xlu0 %48, %v31
    %v50 = vpop.permute.xlu0 %49
    %53 = vset.pattern.permute.xlu0 0
    %54 = vperm.xlu0 %53, %v32
    %v55 = vpop.permute.xlu0 %54
    %58 = vset.pattern.permute.xlu0 0
    %59 = vperm.xlu0 %58, %v33
    %v60 = vpop.permute.xlu0 %59
    %63 = vset.pattern.permute.xlu0 0
    %64 = vperm.xlu0 %63, %v34
    %v65 = vpop.permute.xlu0 %64
    %68 = vset.pattern.permute.xlu0 0
    %69 = vperm.xlu0 %68, %v35
    %v70 = vpop.permute.xlu0 %69
    %73 = vset.pattern.permute.xlu0 0
    %74 = vperm.xlu0 %73, %v36
    %v75 = vpop.permute.xlu0 %74
    %78 = vset.pattern.permute.xlu0 0
    %79 = vperm.xlu0 %78, %v37
    %v80 = vpop.permute.xlu0 %79
    %83 = vset.pattern.permute.xlu0 0
    %84 = vperm.xlu0 %83, %v38
    %v85 = vpop.permute.xlu0 %84
    %88 = vset.pattern.permute.xlu0 0
    %89 = vperm.xlu0 %88, %v39
    %v90 = vpop.permute.xlu0 %89
    %93 = vset.pattern.permute.xlu0 0
    %94 = vperm.xlu0 %93, %v40
    %v95 = vpop.permute.xlu0 %94
    %98 = vset.pattern.permute.xlu0 0
    %99 = vperm.xlu0 %98, %v41
    %v100 = vpop.permute.xlu0 %99
    %103 = vset.pattern.permute.xlu0 0
    %104 = vperm.xlu0 %103, %v42
    %v105 = vpop.permute.xlu0 %104
    %108 = vset.pattern.permute.xlu0 0
    %109 = vperm.xlu0 %108, %v43
    %v110 = vpop.permute.xlu0 %109
    %113 = vset.pattern.permute.xlu0 0
    %114 = vperm.xlu0 %113, %v44
    %v115 = vpop.permute.xlu0 %114
    %118 = vset.pattern.permute.xlu0 0
    %119 = vperm.xlu0 %118, %v45
    %v120 = vpop.permute.xlu0 %119
    %123 = vset.pattern.permute.xlu0 0
    %124 = vperm.xlu0 %123, %v46
    %v125 = vpop.permute.xlu0 %124
    %v128 = vlaneseq
    %v129 = vshrl.u32 %v128, 7
    %v130 = vsub.s32 0, %v129
    %v131 = vrot.slane %v30, %v130
    %v133 = vmul.f32 %v50, %v131
    %v134 = vmul.f32 %v55, %v131
    %v135 = vmul.f32 %v60, %v131
    %v136 = vmul.f32 %v65, %v131
    %v137 = vmul.f32 %v70, %v131
    %v138 = vmul.f32 %v75, %v131
    %v139 = vmul.f32 %v80, %v131
    %v140 = vmul.f32 %v85, %v131
    %v141 = vmul.f32 %v90, %v131
    %v142 = vmul.f32 %v95, %v131
    %v143 = vmul.f32 %v100, %v131
    %v144 = vmul.f32 %v105, %v131
    %v145 = vmul.f32 %v110, %v131
    %v146 = vmul.f32 %v115, %v131
    %v147 = vmul.f32 %v120, %v131
    %v148 = vmul.f32 %v125, %v131
    %v149 = vld [vmem:[%s2] sm:$0xff]
    %v150 = vld [vmem:[%s2 + $0x8] sm:$0xff]
    %v151 = vld [vmem:[%s2 + $0x10] sm:$0xff]
    %v152 = vld [vmem:[%s2 + $0x18] sm:$0xff]
    %v153 = vld [vmem:[%s2 + $0x20] sm:$0xff]
    %v154 = vld [vmem:[%s2 + $0x28] sm:$0xff]
    %v155 = vld [vmem:[%s2 + $0x30] sm:$0xff]
    %v156 = vld [vmem:[%s2 + $0x38] sm:$0xff]
    %v157 = vld [vmem:[%s2 + $0x40] sm:$0xff]
    %v158 = vld [vmem:[%s2 + $0x48] sm:$0xff]
    %v159 = vld [vmem:[%s2 + $0x50] sm:$0xff]
    %v160 = vld [vmem:[%s2 + $0x58] sm:$0xff]
    %v161 = vld [vmem:[%s2 + $0x60] sm:$0xff]
    %v162 = vld [vmem:[%s2 + $0x68] sm:$0xff]
    %v163 = vld [vmem:[%s2 + $0x70] sm:$0xff]
    %v164 = vld [vmem:[%s2 + $0x78] sm:$0xff]
    %166 = vset.pattern.permute.xlu0 0
    %167 = vperm.xlu0 %166, %v149
    %v168 = vpop.permute.xlu0 %167
    %171 = vset.pattern.permute.xlu0 0
    %172 = vperm.xlu0 %171, %v150
    %v173 = vpop.permute.xlu0 %172
    %176 = vset.pattern.permute.xlu0 0
    %177 = vperm.xlu0 %176, %v151
    %v178 = vpop.permute.xlu0 %177
    %181 = vset.pattern.permute.xlu0 0
    %182 = vperm.xlu0 %181, %v152
    %v183 = vpop.permute.xlu0 %182
    %186 = vset.pattern.permute.xlu0 0
    %187 = vperm.xlu0 %186, %v153
    %v188 = vpop.permute.xlu0 %187
    %191 = vset.pattern.permute.xlu0 0
    %192 = vperm.xlu0 %191, %v154
    %v193 = vpop.permute.xlu0 %192
    %196 = vset.pattern.permute.xlu0 0
    %197 = vperm.xlu0 %196, %v155
    %v198 = vpop.permute.xlu0 %197
    %201 = vset.pattern.permute.xlu0 0
    %202 = vperm.xlu0 %201, %v156
    %v203 = vpop.permute.xlu0 %202
    %206 = vset.pattern.permute.xlu0 0
    %207 = vperm.xlu0 %206, %v157
    %v208 = vpop.permute.xlu0 %207
    %211 = vset.pattern.permute.xlu0 0
    %212 = vperm.xlu0 %211, %v158
    %v213 = vpop.permute.xlu0 %212
    %216 = vset.pattern.permute.xlu0 0
    %217 = vperm.xlu0 %216, %v159
    %v218 = vpop.permute.xlu0 %217
    %221 = vset.pattern.permute.xlu0 0
    %222 = vperm.xlu0 %221, %v160
    %v223 = vpop.permute.xlu0 %222
    %226 = vset.pattern.permute.xlu0 0
    %227 = vperm.xlu0 %226, %v161
    %v228 = vpop.permute.xlu0 %227
    %231 = vset.pattern.permute.xlu0 0
    %232 = vperm.xlu0 %231, %v162
    %v233 = vpop.permute.xlu0 %232
    %236 = vset.pattern.permute.xlu0 0
    %237 = vperm.xlu0 %236, %v163
    %v238 = vpop.permute.xlu0 %237
    %241 = vset.pattern.permute.xlu0 0
    %242 = vperm.xlu0 %241, %v164
    %v243 = vpop.permute.xlu0 %242
    %v245 = vadd.f32 %v133, %v168
    %v246 = vadd.f32 %v134, %v173
    %v247 = vadd.f32 %v135, %v178
    %v248 = vadd.f32 %v136, %v183
    %v249 = vadd.f32 %v137, %v188
    %v250 = vadd.f32 %v138, %v193
    %v251 = vadd.f32 %v139, %v198
    %v252 = vadd.f32 %v140, %v203
    %v253 = vadd.f32 %v141, %v208
    %v254 = vadd.f32 %v142, %v213
    %v255 = vadd.f32 %v143, %v218
    %v256 = vadd.f32 %v144, %v223
    %v257 = vadd.f32 %v145, %v228
    %v258 = vadd.f32 %v146, %v233
    %v259 = vadd.f32 %v147, %v238
    %v260 = vadd.f32 %v148, %v243
    %v261 = vmax.f32 %v245, 0.0
    %v262 = vmax.f32 %v246, 0.0
    %v263 = vmax.f32 %v247, 0.0
    %v264 = vmax.f32 %v248, 0.0
    %v265 = vmax.f32 %v249, 0.0
    %v266 = vmax.f32 %v250, 0.0
    %v267 = vmax.f32 %v251, 0.0
    %v268 = vmax.f32 %v252, 0.0
    %v269 = vmax.f32 %v253, 0.0
    %v270 = vmax.f32 %v254, 0.0
    %v271 = vmax.f32 %v255, 0.0
    %v272 = vmax.f32 %v256, 0.0
    %v273 = vmax.f32 %v257, 0.0
    %v274 = vmax.f32 %v258, 0.0
    %v275 = vmax.f32 %v259, 0.0
    %v276 = vmax.f32 %v260, 0.0
    %v277 = vld [vmem:[%s3] sm:$0xff]
    %v278 = vld [vmem:[%s3 + $0x8] sm:$0xff]
    %v279 = vld [vmem:[%s3 + $0x10] sm:$0xff]
    %v280 = vld [vmem:[%s3 + $0x18] sm:$0xff]
    %v281 = vld [vmem:[%s3 + $0x20] sm:$0xff]
    %v282 = vld [vmem:[%s3 + $0x28] sm:$0xff]
    %v283 = vld [vmem:[%s3 + $0x30] sm:$0xff]
    %v284 = vld [vmem:[%s3 + $0x38] sm:$0xff]
    %v285 = vld [vmem:[%s3 + $0x40] sm:$0xff]
    %v286 = vld [vmem:[%s3 + $0x48] sm:$0xff]
    %v287 = vld [vmem:[%s3 + $0x50] sm:$0xff]
    %v288 = vld [vmem:[%s3 + $0x58] sm:$0xff]
    %v289 = vld [vmem:[%s3 + $0x60] sm:$0xff]
    %v290 = vld [vmem:[%s3 + $0x68] sm:$0xff]
    %v291 = vld [vmem:[%s3 + $0x70] sm:$0xff]
    %v292 = vld [vmem:[%s3 + $0x78] sm:$0xff]
    %v293 = vld [vmem:[%s4] sm:$0xff]
    %v294 = vld [vmem:[%s4 + $0x8] sm:$0xff]
    %v295 = vld [vmem:[%s4 + $0x10] sm:$0xff]
    %v296 = vld [vmem:[%s4 + $0x18] sm:$0xff]
    %v297 = vld [vmem:[%s4 + $0x20] sm:$0xff]
    %v298 = vld [vmem:[%s4 + $0x28] sm:$0xff]
    %v299 = vld [vmem:[%s4 + $0x30] sm:$0xff]
    %v300 = vld [vmem:[%s4 + $0x38] sm:$0xff]
    %v301 = vld [vmem:[%s4 + $0x40] sm:$0xff]
    %v302 = vld [vmem:[%s4 + $0x48] sm:$0xff]
    %v303 = vld [vmem:[%s4 + $0x50] sm:$0xff]
    %v304 = vld [vmem:[%s4 + $0x58] sm:$0xff]
    %v305 = vld [vmem:[%s4 + $0x60] sm:$0xff]
    %v306 = vld [vmem:[%s4 + $0x68] sm:$0xff]
    %v307 = vld [vmem:[%s4 + $0x70] sm:$0xff]
    %v308 = vld [vmem:[%s4 + $0x78] sm:$0xff]
    %310 = vset.pattern.permute.xlu0 0
    %311 = vperm.xlu0 %310, %v293
    %v312 = vpop.permute.xlu0 %311
    %315 = vset.pattern.permute.xlu0 0
    %316 = vperm.xlu0 %315, %v294
    %v317 = vpop.permute.xlu0 %316
    %320 = vset.pattern.permute.xlu0 0
    %321 = vperm.xlu0 %320, %v295
    %v322 = vpop.permute.xlu0 %321
    %325 = vset.pattern.permute.xlu0 0
    %326 = vperm.xlu0 %325, %v296
    %v327 = vpop.permute.xlu0 %326
    %330 = vset.pattern.permute.xlu0 0
    %331 = vperm.xlu0 %330, %v297
    %v332 = vpop.permute.xlu0 %331
    %335 = vset.pattern.permute.xlu0 0
    %336 = vperm.xlu0 %335, %v298
    %v337 = vpop.permute.xlu0 %336
    %340 = vset.pattern.permute.xlu0 0
    %341 = vperm.xlu0 %340, %v299
    %v342 = vpop.permute.xlu0 %341
    %345 = vset.pattern.permute.xlu0 0
    %346 = vperm.xlu0 %345, %v300
    %v347 = vpop.permute.xlu0 %346
    %350 = vset.pattern.permute.xlu0 0
    %351 = vperm.xlu0 %350, %v301
    %v352 = vpop.permute.xlu0 %351
    %355 = vset.pattern.permute.xlu0 0
    %356 = vperm.xlu0 %355, %v302
    %v357 = vpop.permute.xlu0 %356
    %360 = vset.pattern.permute.xlu0 0
    %361 = vperm.xlu0 %360, %v303
    %v362 = vpop.permute.xlu0 %361
    %365 = vset.pattern.permute.xlu0 0
    %366 = vperm.xlu0 %365, %v304
    %v367 = vpop.permute.xlu0 %366
    %370 = vset.pattern.permute.xlu0 0
    %371 = vperm.xlu0 %370, %v305
    %v372 = vpop.permute.xlu0 %371
    %375 = vset.pattern.permute.xlu0 0
    %376 = vperm.xlu0 %375, %v306
    %v377 = vpop.permute.xlu0 %376
    %380 = vset.pattern.permute.xlu0 0
    %381 = vperm.xlu0 %380, %v307
    %v382 = vpop.permute.xlu0 %381
    %385 = vset.pattern.permute.xlu0 0
    %386 = vperm.xlu0 %385, %v308
    %v387 = vpop.permute.xlu0 %386
    %389 = vmatprep.subr.mxu0 0.0
    %390 = vmatpush1.msra.mxu0 %v261
    %391 = vmatprep.subr.mxu0 0.0
    %392 = vmatpush1.msra.mxu0 %v262
    %393 = vmatprep.subr.mxu0 0.0
    %394 = vmatpush1.msra.mxu0 %v263
    %395 = vmatprep.subr.mxu0 0.0
    %396 = vmatpush1.msra.mxu0 %v264
    %397 = vmatprep.subr.mxu0 0.0
    %398 = vmatpush1.msra.mxu0 %v265
    %399 = vmatprep.subr.mxu0 0.0
    %400 = vmatpush1.msra.mxu0 %v266
    %401 = vmatprep.subr.mxu0 0.0
    %402 = vmatpush1.msra.mxu0 %v267
    %403 = vmatprep.subr.mxu0 0.0
    %404 = vmatpush1.msra.mxu0 %v268
    %405 = vmatprep.subr.mxu0 0.0
    %406 = vmatpush1.msra.mxu0 %v269
    %407 = vmatprep.subr.mxu0 0.0
    %408 = vmatpush1.msra.mxu0 %v270
    %409 = vmatprep.subr.mxu0 0.0
    %410 = vmatpush1.msra.mxu0 %v271
    %411 = vmatprep.subr.mxu0 0.0
    %412 = vmatpush1.msra.mxu0 %v272
    %413 = vmatprep.subr.mxu0 0.0
    %414 = vmatpush1.msra.mxu0 %v273
    %415 = vmatprep.subr.mxu0 0.0
    %416 = vmatpush1.msra.mxu0 %v274
    %417 = vmatprep.subr.mxu0 0.0
    %418 = vmatpush1.msra.mxu0 %v275
    %419 = vmatprep.subr.mxu0 0.0
    %420 = vmatpush1.msra.mxu0 %v276
    %421 = vmatprep.subr.mxu0 0.0
    %422 = vmatpush1.msra.mxu0 0.0
    %423 = vmatprep.subr.mxu0 0.0
    %424 = vmatpush1.msra.mxu0 0.0
    %425 = vmatprep.subr.mxu0 0.0
    %426 = vmatpush1.msra.mxu0 0.0
    %427 = vmatprep.subr.mxu0 0.0
    %428 = vmatpush1.msra.mxu0 0.0
    %429 = vmatprep.subr.mxu0 0.0
    %430 = vmatpush1.msra.mxu0 0.0
    %431 = vmatprep.subr.mxu0 0.0
    %432 = vmatpush1.msra.mxu0 0.0
    %433 = vmatprep.subr.mxu0 0.0
    %434 = vmatpush1.msra.mxu0 0.0
    %435 = vmatprep.subr.mxu0 0.0
    %436 = vmatpush1.msra.mxu0 0.0
    %437 = vmatprep.subr.mxu0 0.0
    %438 = vmatpush1.msra.mxu0 0.0
    %439 = vmatprep.subr.mxu0 0.0
    %440 = vmatpush1.msra.mxu0 0.0
    %441 = vmatprep.subr.mxu0 0.0
    %442 = vmatpush1.msra.mxu0 0.0
    %443 = vmatprep.subr.mxu0 0.0
    %444 = vmatpush1.msra.mxu0 0.0
    %445 = vmatprep.subr.mxu0 0.0
    %446 = vmatpush1.msra.mxu0 0.0
    %447 = vmatprep.subr.mxu0 0.0
    %448 = vmatpush1.msra.mxu0 0.0
    %449 = vmatprep.subr.mxu0 0.0
    %450 = vmatpush1.msra.mxu0 0.0
    %451 = vmatprep.subr.mxu0 0.0
    %452 = vmatpush1.msra.mxu0 0.0
    %453 = vmatprep.mubr.f32.mxu0 0.0
    %454 = vmatmul.mubr.f32.gmra.mrb[0].mxu0 %v277
    %v455 = vpop.f32.mrb[0].mxu0
    %v456 = vadd.f32 %v312, %v455
    %v457 = vpop.f32.mrb[0].mxu0
    %458 = vmatprep.mubr.f32.mxu0 0.0
    %459 = vmatmul.mubr.f32.gmra.mrb[0].mxu0 %v278
    %v460 = vpop.f32.mrb[0].mxu0
    %v461 = vadd.f32 %v317, %v460
    %v462 = vpop.f32.mrb[0].mxu0
    %463 = vmatprep.mubr.f32.mxu0 0.0
    %464 = vmatmul.mubr.f32.gmra.mrb[0].mxu0 %v279
    %v465 = vpop.f32.mrb[0].mxu0
    %v466 = vadd.f32 %v322, %v465
    %v467 = vpop.f32.mrb[0].mxu0
    %468 = vmatprep.mubr.f32.mxu0 0.0
    %469 = vmatmul.mubr.f32.gmra.mrb[0].mxu0 %v280
    %v470 = vpop.f32.mrb[0].mxu0
    %v471 = vadd.f32 %v327, %v470
    %v472 = vpop.f32.mrb[0].mxu0
    %473 = vmatprep.mubr.f32.mxu0 0.0
    %474 = vmatmul.mubr.f32.gmra.mrb[0].mxu0 %v281
    %v475 = vpop.f32.mrb[0].mxu0
    %v476 = vadd.f32 %v332, %v475
    %v477 = vpop.f32.mrb[0].mxu0
    %478 = vmatprep.mubr.f32.mxu0 0.0
    %479 = vmatmul.mubr.f32.gmra.mrb[0].mxu0 %v282
    %v480 = vpop.f32.mrb[0].mxu0
    %v481 = vadd.f32 %v337, %v480
    %v482 = vpop.f32.mrb[0].mxu0
    %483 = vmatprep.mubr.f32.mxu0 0.0
    %484 = vmatmul.mubr.f32.gmra.mrb[0].mxu0 %v283
    %v485 = vpop.f32.mrb[0].mxu0
    %v486 = vadd.f32 %v342, %v485
    %v487 = vpop.f32.mrb[0].mxu0
    %488 = vmatprep.mubr.f32.mxu0 0.0
    %489 = vmatmul.mubr.f32.gmra.mrb[0].mxu0 %v284
    %v490 = vpop.f32.mrb[0].mxu0
    %v491 = vadd.f32 %v347, %v490
    %v492 = vpop.f32.mrb[0].mxu0
    %493 = vmatprep.mubr.f32.mxu0 0.0
    %494 = vmatmul.mubr.f32.gmra.mrb[0].mxu0 %v285
    %v495 = vpop.f32.mrb[0].mxu0
    %v496 = vadd.f32 %v352, %v495
    %v497 = vpop.f32.mrb[0].mxu0
    %498 = vmatprep.mubr.f32.mxu0 0.0
    %499 = vmatmul.mubr.f32.gmra.mrb[0].mxu0 %v286
    %v500 = vpop.f32.mrb[0].mxu0
    %v501 = vadd.f32 %v357, %v500
    %v502 = vpop.f32.mrb[0].mxu0
    %503 = vmatprep.mubr.f32.mxu0 0.0
    %504 = vmatmul.mubr.f32.gmra.mrb[0].mxu0 %v287
    %v505 = vpop.f32.mrb[0].mxu0
    %v506 = vadd.f32 %v362, %v505
    %v507 = vpop.f32.mrb[0].mxu0
    %508 = vmatprep.mubr.f32.mxu0 0.0
    %509 = vmatmul.mubr.f32.gmra.mrb[0].mxu0 %v288
    %v510 = vpop.f32.mrb[0].mxu0
    %v511 = vadd.f32 %v367, %v510
    %v512 = vpop.f32.mrb[0].mxu0
    %513 = vmatprep.mubr.f32.mxu0 0.0
    %514 = vmatmul.mubr.f32.gmra.mrb[0].mxu0 %v289
    %v515 = vpop.f32.mrb[0].mxu0
    %v516 = vadd.f32 %v372, %v515
    %v517 = vpop.f32.mrb[0].mxu0
    %518 = vmatprep.mubr.f32.mxu0 0.0
    %519 = vmatmul.mubr.f32.gmra.mrb[0].mxu0 %v290
    %v520 = vpop.f32.mrb[0].mxu0
    %v521 = vadd.f32 %v377, %v520
    %v522 = vpop.f32.mrb[0].mxu0
    %523 = vmatprep.mubr.f32.mxu0 0.0
    %524 = vmatmul.mubr.f32.gmra.mrb[0].mxu0 %v291
    %v525 = vpop.f32.mrb[0].mxu0
    %v526 = vadd.f32 %v382, %v525
    %v527 = vpop.f32.mrb[0].mxu0
    %528 = vmatprep.mubr.f32.mxu0 0.0
    %529 = vmatmul.mubr.f32.gmra.mrb[0].mxu0 %v292
    %v530 = vpop.f32.mrb[0].mxu0
    %v531 = vadd.f32 %v387, %v530
    %v532 = vpop.f32.mrb[0].mxu0
    %533 = vdwg.mxu0
    %v534 = vmax.f32 %v456, 0.0
    %v535 = vmax.f32 %v461, 0.0
    %v536 = vmax.f32 %v466, 0.0
    %v537 = vmax.f32 %v471, 0.0
    %v538 = vmax.f32 %v476, 0.0
    %v539 = vmax.f32 %v481, 0.0
    %v540 = vmax.f32 %v486, 0.0
    %v541 = vmax.f32 %v491, 0.0
    %v542 = vmax.f32 %v496, 0.0
    %v543 = vmax.f32 %v501, 0.0
    %v544 = vmax.f32 %v506, 0.0
    %v545 = vmax.f32 %v511, 0.0
    %v546 = vmax.f32 %v516, 0.0
    %v547 = vmax.f32 %v521, 0.0
    %v548 = vmax.f32 %v526, 0.0
    %v549 = vmax.f32 %v531, 0.0
    %v550 = vld [vmem:[%s5] sm:$0xff]
    %v551 = vld [vmem:[%s5 + $0x8] sm:$0xff]
    %v552 = vld [vmem:[%s5 + $0x10] sm:$0xff]
    %v553 = vld [vmem:[%s5 + $0x18] sm:$0xff]
    %v554 = vld [vmem:[%s5 + $0x20] sm:$0xff]
    %v555 = vld [vmem:[%s5 + $0x28] sm:$0xff]
    %v556 = vld [vmem:[%s5 + $0x30] sm:$0xff]
    %v557 = vld [vmem:[%s5 + $0x38] sm:$0xff]
    %v558 = vld [vmem:[%s5 + $0x40] sm:$0xff]
    %v559 = vld [vmem:[%s5 + $0x48] sm:$0xff]
    %v560 = vld [vmem:[%s5 + $0x50] sm:$0xff]
    %v561 = vld [vmem:[%s5 + $0x58] sm:$0xff]
    %v562 = vld [vmem:[%s5 + $0x60] sm:$0xff]
    %v563 = vld [vmem:[%s5 + $0x68] sm:$0xff]
    %v564 = vld [vmem:[%s5 + $0x70] sm:$0xff]
    %v565 = vld [vmem:[%s5 + $0x78] sm:$0xff]
    %v566 = vld [vmem:[%s6] sm:$0xff]
    %v567 = vld [vmem:[%s6 + $0x8] sm:$0xff]
    %v568 = vld [vmem:[%s6 + $0x10] sm:$0xff]
    %v569 = vld [vmem:[%s6 + $0x18] sm:$0xff]
    %v570 = vld [vmem:[%s6 + $0x20] sm:$0xff]
    %v571 = vld [vmem:[%s6 + $0x28] sm:$0xff]
    %v572 = vld [vmem:[%s6 + $0x30] sm:$0xff]
    %v573 = vld [vmem:[%s6 + $0x38] sm:$0xff]
    %v574 = vld [vmem:[%s6 + $0x40] sm:$0xff]
    %v575 = vld [vmem:[%s6 + $0x48] sm:$0xff]
    %v576 = vld [vmem:[%s6 + $0x50] sm:$0xff]
    %v577 = vld [vmem:[%s6 + $0x58] sm:$0xff]
    %v578 = vld [vmem:[%s6 + $0x60] sm:$0xff]
    %v579 = vld [vmem:[%s6 + $0x68] sm:$0xff]
    %v580 = vld [vmem:[%s6 + $0x70] sm:$0xff]
    %v581 = vld [vmem:[%s6 + $0x78] sm:$0xff]
    %583 = vset.pattern.permute.xlu0 0
    %584 = vperm.xlu0 %583, %v566
    %v585 = vpop.permute.xlu0 %584
    %588 = vset.pattern.permute.xlu0 0
    %589 = vperm.xlu0 %588, %v567
    %v590 = vpop.permute.xlu0 %589
    %593 = vset.pattern.permute.xlu0 0
    %594 = vperm.xlu0 %593, %v568
    %v595 = vpop.permute.xlu0 %594
    %598 = vset.pattern.permute.xlu0 0
    %599 = vperm.xlu0 %598, %v569
    %v600 = vpop.permute.xlu0 %599
    %603 = vset.pattern.permute.xlu0 0
    %604 = vperm.xlu0 %603, %v570
    %v605 = vpop.permute.xlu0 %604
    %608 = vset.pattern.permute.xlu0 0
    %609 = vperm.xlu0 %608, %v571
    %v610 = vpop.permute.xlu0 %609
    %613 = vset.pattern.permute.xlu0 0
    %614 = vperm.xlu0 %613, %v572
    %v615 = vpop.permute.xlu0 %614
    %618 = vset.pattern.permute.xlu0 0
    %619 = vperm.xlu0 %618, %v573
    %v620 = vpop.permute.xlu0 %619
    %623 = vset.pattern.permute.xlu0 0
    %624 = vperm.xlu0 %623, %v574
    %v625 = vpop.permute.xlu0 %624
    %628 = vset.pattern.permute.xlu0 0
    %629 = vperm.xlu0 %628, %v575
    %v630 = vpop.permute.xlu0 %629
    %633 = vset.pattern.permute.xlu0 0
    %634 = vperm.xlu0 %633, %v576
    %v635 = vpop.permute.xlu0 %634
    %638 = vset.pattern.permute.xlu0 0
    %639 = vperm.xlu0 %638, %v577
    %v640 = vpop.permute.xlu0 %639
    %643 = vset.pattern.permute.xlu0 0
    %644 = vperm.xlu0 %643, %v578
    %v645 = vpop.permute.xlu0 %644
    %648 = vset.pattern.permute.xlu0 0
    %649 = vperm.xlu0 %648, %v579
    %v650 = vpop.permute.xlu0 %649
    %653 = vset.pattern.permute.xlu0 0
    %654 = vperm.xlu0 %653, %v580
    %v655 = vpop.permute.xlu0 %654
    %658 = vset.pattern.permute.xlu0 0
    %659 = vperm.xlu0 %658, %v581
    %v660 = vpop.permute.xlu0 %659
    %662 = vmatprep.subr.mxu0 0.0
    %663 = vmatpush1.msra.mxu0 %v534
    %664 = vmatprep.subr.mxu0 0.0
    %665 = vmatpush1.msra.mxu0 %v535
    %666 = vmatprep.subr.mxu0 0.0
    %667 = vmatpush1.msra.mxu0 %v536
    %668 = vmatprep.subr.mxu0 0.0
    %669 = vmatpush1.msra.mxu0 %v537
    %670 = vmatprep.subr.mxu0 0.0
    %671 = vmatpush1.msra.mxu0 %v538
    %672 = vmatprep.subr.mxu0 0.0
    %673 = vmatpush1.msra.mxu0 %v539
    %674 = vmatprep.subr.mxu0 0.0
    %675 = vmatpush1.msra.mxu0 %v540
    %676 = vmatprep.subr.mxu0 0.0
    %677 = vmatpush1.msra.mxu0 %v541
    %678 = vmatprep.subr.mxu0 0.0
    %679 = vmatpush1.msra.mxu0 %v542
    %680 = vmatprep.subr.mxu0 0.0
    %681 = vmatpush1.msra.mxu0 %v543
    %682 = vmatprep.subr.mxu0 0.0
    %683 = vmatpush1.msra.mxu0 %v544
    %684 = vmatprep.subr.mxu0 0.0
    %685 = vmatpush1.msra.mxu0 %v545
    %686 = vmatprep.subr.mxu0 0.0
    %687 = vmatpush1.msra.mxu0 %v546
    %688 = vmatprep.subr.mxu0 0.0
    %689 = vmatpush1.msra.mxu0 %v547
    %690 = vmatprep.subr.mxu0 0.0
    %691 = vmatpush1.msra.mxu0 %v548
    %692 = vmatprep.subr.mxu0 0.0
    %693 = vmatpush1.msra.mxu0 %v549
    %694 = vmatprep.subr.mxu0 0.0
    %695 = vmatpush1.msra.mxu0 0.0
    %696 = vmatprep.subr.mxu0 0.0
    %697 = vmatpush1.msra.mxu0 0.0
    %698 = vmatprep.subr.mxu0 0.0
    %699 = vmatpush1.msra.mxu0 0.0
    %700 = vmatprep.subr.mxu0 0.0
    %701 = vmatpush1.msra.mxu0 0.0
    %702 = vmatprep.subr.mxu0 0.0
    %703 = vmatpush1.msra.mxu0 0.0
    %704 = vmatprep.subr.mxu0 0.0
    %705 = vmatpush1.msra.mxu0 0.0
    %706 = vmatprep.subr.mxu0 0.0
    %707 = vmatpush1.msra.mxu0 0.0
    %708 = vmatprep.subr.mxu0 0.0
    %709 = vmatpush1.msra.mxu0 0.0
    %710 = vmatprep.subr.mxu0 0.0
    %711 = vmatpush1.msra.mxu0 0.0
    %712 = vmatprep.subr.mxu0 0.0
    %713 = vmatpush1.msra.mxu0 0.0
    %714 = vmatprep.subr.mxu0 0.0
    %715 = vmatpush1.msra.mxu0 0.0
    %716 = vmatprep.subr.mxu0 0.0
    %717 = vmatpush1.msra.mxu0 0.0
    %718 = vmatprep.subr.mxu0 0.0
    %719 = vmatpush1.msra.mxu0 0.0
    %720 = vmatprep.subr.mxu0 0.0
    %721 = vmatpush1.msra.mxu0 0.0
    %722 = vmatprep.subr.mxu0 0.0
    %723 = vmatpush1.msra.mxu0 0.0
    %724 = vmatprep.subr.mxu0 0.0
    %725 = vmatpush1.msra.mxu0 0.0
    %726 = vmatprep.mubr.f32.mxu0 0.0
    %727 = vmatmul.mubr.f32.gmra.mrb[0].mxu0 %v550
    %v728 = vpop.f32.mrb[0].mxu0
    %v729 = vadd.f32 %v585, %v728
    %v730 = vpop.f32.mrb[0].mxu0
    %731 = vmatprep.mubr.f32.mxu0 0.0
    %732 = vmatmul.mubr.f32.gmra.mrb[0].mxu0 %v551
    %v733 = vpop.f32.mrb[0].mxu0
    %v734 = vadd.f32 %v590, %v733
    %v735 = vpop.f32.mrb[0].mxu0
    %736 = vmatprep.mubr.f32.mxu0 0.0
    %737 = vmatmul.mubr.f32.gmra.mrb[0].mxu0 %v552
    %v738 = vpop.f32.mrb[0].mxu0
    %v739 = vadd.f32 %v595, %v738
    %v740 = vpop.f32.mrb[0].mxu0
    %741 = vmatprep.mubr.f32.mxu0 0.0
    %742 = vmatmul.mubr.f32.gmra.mrb[0].mxu0 %v553
    %v743 = vpop.f32.mrb[0].mxu0
    %v744 = vadd.f32 %v600, %v743
    %v745 = vpop.f32.mrb[0].mxu0
    %746 = vmatprep.mubr.f32.mxu0 0.0
    %747 = vmatmul.mubr.f32.gmra.mrb[0].mxu0 %v554
    %v748 = vpop.f32.mrb[0].mxu0
    %v749 = vadd.f32 %v605, %v748
    %v750 = vpop.f32.mrb[0].mxu0
    %751 = vmatprep.mubr.f32.mxu0 0.0
    %752 = vmatmul.mubr.f32.gmra.mrb[0].mxu0 %v555
    %v753 = vpop.f32.mrb[0].mxu0
    %v754 = vadd.f32 %v610, %v753
    %v755 = vpop.f32.mrb[0].mxu0
    %756 = vmatprep.mubr.f32.mxu0 0.0
    %757 = vmatmul.mubr.f32.gmra.mrb[0].mxu0 %v556
    %v758 = vpop.f32.mrb[0].mxu0
    %v759 = vadd.f32 %v615, %v758
    %v760 = vpop.f32.mrb[0].mxu0
    %761 = vmatprep.mubr.f32.mxu0 0.0
    %762 = vmatmul.mubr.f32.gmra.mrb[0].mxu0 %v557
    %v763 = vpop.f32.mrb[0].mxu0
    %v764 = vadd.f32 %v620, %v763
    %v765 = vpop.f32.mrb[0].mxu0
    %766 = vmatprep.mubr.f32.mxu0 0.0
    %767 = vmatmul.mubr.f32.gmra.mrb[0].mxu0 %v558
    %v768 = vpop.f32.mrb[0].mxu0
    %v769 = vadd.f32 %v625, %v768
    %v770 = vpop.f32.mrb[0].mxu0
    %771 = vmatprep.mubr.f32.mxu0 0.0
    %772 = vmatmul.mubr.f32.gmra.mrb[0].mxu0 %v559
    %v773 = vpop.f32.mrb[0].mxu0
    %v774 = vadd.f32 %v630, %v773
    %v775 = vpop.f32.mrb[0].mxu0
    %776 = vmatprep.mubr.f32.mxu0 0.0
    %777 = vmatmul.mubr.f32.gmra.mrb[0].mxu0 %v560
    %v778 = vpop.f32.mrb[0].mxu0
    %v779 = vadd.f32 %v635, %v778
    %v780 = vpop.f32.mrb[0].mxu0
    %781 = vmatprep.mubr.f32.mxu0 0.0
    %782 = vmatmul.mubr.f32.gmra.mrb[0].mxu0 %v561
    %v783 = vpop.f32.mrb[0].mxu0
    %v784 = vadd.f32 %v640, %v783
    %v785 = vpop.f32.mrb[0].mxu0
    %786 = vmatprep.mubr.f32.mxu0 0.0
    %787 = vmatmul.mubr.f32.gmra.mrb[0].mxu0 %v562
    %v788 = vpop.f32.mrb[0].mxu0
    %v789 = vadd.f32 %v645, %v788
    %v790 = vpop.f32.mrb[0].mxu0
    %791 = vmatprep.mubr.f32.mxu0 0.0
    %792 = vmatmul.mubr.f32.gmra.mrb[0].mxu0 %v563
    %v793 = vpop.f32.mrb[0].mxu0
    %v794 = vadd.f32 %v650, %v793
    %v795 = vpop.f32.mrb[0].mxu0
    %796 = vmatprep.mubr.f32.mxu0 0.0
    %797 = vmatmul.mubr.f32.gmra.mrb[0].mxu0 %v564
    %v798 = vpop.f32.mrb[0].mxu0
    %v799 = vadd.f32 %v655, %v798
    %v800 = vpop.f32.mrb[0].mxu0
    %801 = vmatprep.mubr.f32.mxu0 0.0
    %802 = vmatmul.mubr.f32.gmra.mrb[0].mxu0 %v565
    %v803 = vpop.f32.mrb[0].mxu0
    %v804 = vadd.f32 %v660, %v803
    %v805 = vpop.f32.mrb[0].mxu0
    %806 = vdwg.mxu0
    %v807 = vmax.f32 %v729, 0.0
    %v808 = vmax.f32 %v734, 0.0
    %v809 = vmax.f32 %v739, 0.0
    %v810 = vmax.f32 %v744, 0.0
    %v811 = vmax.f32 %v749, 0.0
    %v812 = vmax.f32 %v754, 0.0
    %v813 = vmax.f32 %v759, 0.0
    %v814 = vmax.f32 %v764, 0.0
    %v815 = vmax.f32 %v769, 0.0
    %v816 = vmax.f32 %v774, 0.0
    %v817 = vmax.f32 %v779, 0.0
    %v818 = vmax.f32 %v784, 0.0
    %v819 = vmax.f32 %v789, 0.0
    %v820 = vmax.f32 %v794, 0.0
    %v821 = vmax.f32 %v799, 0.0
    %v822 = vmax.f32 %v804, 0.0
    %v823 = vld [vmem:[%s7] sm:$0xff]
    %v824 = vld [vmem:[%s7 + $0x8] sm:$0xff]
    %v825 = vld [vmem:[%s7 + $0x10] sm:$0xff]
    %v826 = vld [vmem:[%s7 + $0x18] sm:$0xff]
    %v827 = vld [vmem:[%s7 + $0x20] sm:$0xff]
    %v828 = vld [vmem:[%s7 + $0x28] sm:$0xff]
    %v829 = vld [vmem:[%s7 + $0x30] sm:$0xff]
    %v830 = vld [vmem:[%s7 + $0x38] sm:$0xff]
    %v831 = vld [vmem:[%s7 + $0x40] sm:$0xff]
    %v832 = vld [vmem:[%s7 + $0x48] sm:$0xff]
    %v833 = vld [vmem:[%s7 + $0x50] sm:$0xff]
    %v834 = vld [vmem:[%s7 + $0x58] sm:$0xff]
    %v835 = vld [vmem:[%s7 + $0x60] sm:$0xff]
    %v836 = vld [vmem:[%s7 + $0x68] sm:$0xff]
    %v837 = vld [vmem:[%s7 + $0x70] sm:$0xff]
    %v838 = vld [vmem:[%s7 + $0x78] sm:$0xff]
    %840 = vset.pattern.permute.xlu0 0
    %841 = vperm.xlu0 %840, %v823
    %v842 = vpop.permute.xlu0 %841
    %845 = vset.pattern.permute.xlu0 0
    %846 = vperm.xlu0 %845, %v824
    %v847 = vpop.permute.xlu0 %846
    %850 = vset.pattern.permute.xlu0 0
    %851 = vperm.xlu0 %850, %v825
    %v852 = vpop.permute.xlu0 %851
    %855 = vset.pattern.permute.xlu0 0
    %856 = vperm.xlu0 %855, %v826
    %v857 = vpop.permute.xlu0 %856
    %860 = vset.pattern.permute.xlu0 0
    %861 = vperm.xlu0 %860, %v827
    %v862 = vpop.permute.xlu0 %861
    %865 = vset.pattern.permute.xlu0 0
    %866 = vperm.xlu0 %865, %v828
    %v867 = vpop.permute.xlu0 %866
    %870 = vset.pattern.permute.xlu0 0
    %871 = vperm.xlu0 %870, %v829
    %v872 = vpop.permute.xlu0 %871
    %875 = vset.pattern.permute.xlu0 0
    %876 = vperm.xlu0 %875, %v830
    %v877 = vpop.permute.xlu0 %876
    %880 = vset.pattern.permute.xlu0 0
    %881 = vperm.xlu0 %880, %v831
    %v882 = vpop.permute.xlu0 %881
    %885 = vset.pattern.permute.xlu0 0
    %886 = vperm.xlu0 %885, %v832
    %v887 = vpop.permute.xlu0 %886
    %890 = vset.pattern.permute.xlu0 0
    %891 = vperm.xlu0 %890, %v833
    %v892 = vpop.permute.xlu0 %891
    %895 = vset.pattern.permute.xlu0 0
    %896 = vperm.xlu0 %895, %v834
    %v897 = vpop.permute.xlu0 %896
    %900 = vset.pattern.permute.xlu0 0
    %901 = vperm.xlu0 %900, %v835
    %v902 = vpop.permute.xlu0 %901
    %905 = vset.pattern.permute.xlu0 0
    %906 = vperm.xlu0 %905, %v836
    %v907 = vpop.permute.xlu0 %906
    %910 = vset.pattern.permute.xlu0 0
    %911 = vperm.xlu0 %910, %v837
    %v912 = vpop.permute.xlu0 %911
    %915 = vset.pattern.permute.xlu0 0
    %916 = vperm.xlu0 %915, %v838
    %v917 = vpop.permute.xlu0 %916
    %v919 = vmul.f32 %v807, %v842
    %v920 = vmul.f32 %v808, %v847
    %v921 = vmul.f32 %v809, %v852
    %v922 = vmul.f32 %v810, %v857
    %v923 = vmul.f32 %v811, %v862
    %v924 = vmul.f32 %v812, %v867
    %v925 = vmul.f32 %v813, %v872
    %v926 = vmul.f32 %v814, %v877
    %v927 = vmul.f32 %v815, %v882
    %v928 = vmul.f32 %v816, %v887
    %v929 = vmul.f32 %v817, %v892
    %v930 = vmul.f32 %v818, %v897
    %v931 = vmul.f32 %v819, %v902
    %v932 = vmul.f32 %v820, %v907
    %v933 = vmul.f32 %v821, %v912
    %v934 = vmul.f32 %v822, %v917
    %vm935 = vcmask 64512
    %v936 = vsel %vm935, %v919, 0.0
    %v937 = vsel %vm935, %v920, 0.0
    %v938 = vadd.f32 %v936, %v937
    %v939 = vsel %vm935, %v921, 0.0
    %v940 = vadd.f32 %v938, %v939
    %v941 = vsel %vm935, %v922, 0.0
    %v942 = vadd.f32 %v940, %v941
    %v943 = vsel %vm935, %v923, 0.0
    %v944 = vadd.f32 %v942, %v943
    %v945 = vsel %vm935, %v924, 0.0
    %v946 = vadd.f32 %v944, %v945
    %v947 = vsel %vm935, %v925, 0.0
    %v948 = vadd.f32 %v946, %v947
    %v949 = vsel %vm935, %v926, 0.0
    %v950 = vadd.f32 %v948, %v949
    %v951 = vsel %vm935, %v927, 0.0
    %v952 = vadd.f32 %v950, %v951
    %v953 = vsel %vm935, %v928, 0.0
    %v954 = vadd.f32 %v952, %v953
    %v955 = vsel %vm935, %v929, 0.0
    %v956 = vadd.f32 %v954, %v955
    %v957 = vsel %vm935, %v930, 0.0
    %v958 = vadd.f32 %v956, %v957
    %v959 = vsel %vm935, %v931, 0.0
    %v960 = vadd.f32 %v958, %v959
    %v961 = vsel %vm935, %v932, 0.0
    %v962 = vadd.f32 %v960, %v961
    %v963 = vsel %vm935, %v933, 0.0
    %v964 = vadd.f32 %v962, %v963
    %v965 = vsel %vm935, %v934, 0.0
    %v966 = vadd.f32 %v964, %v965
    %v967 = vrot.slane %v966, 4
    %v968 = vadd.f32 %v966, %v967
    %v969 = vrot.slane %v968, 2
    %v970 = vadd.f32 %v968, %v969
    %v971 = vrot.slane %v970, 1
    %v972 = vadd.f32 %v970, %v971
    %vm973 = vcmask 57344
    %974 = vst.msk [vmem:[#allocation2] sm:$0x1] %vm973, %v972
    // Predicated region
    $region34: #{tpu_custom_call.1} parent=1 // pred_check
      _
    $region35: #{tpu_custom_call.1} parent=1 // pred_check_branch
      %976 = sbr.rel (0) target = $region37
    $region36: #{tpu_custom_call.1} parent=1 // pred_region
      %s978 = ssub.s32 16, 16
      %979 = vsyncadd [#allocation3], %s978
      %s981 = sshll.u32 [#allocation2], 4
      %s982 = int_to_ptr.vmem [resolvable:$true] %s981
      %984 = dma.vmem_to_hbm [thread:$0]  %s982, 16, %s8, [#allocation3]
    $region37: #{tpu_custom_call.1} parent=1 // pred_fallthru
      _
    // Predicated region
    $region38: #{tpu_custom_call.1} parent=1 // pred_check
      _
    $region39: #{tpu_custom_call.1} parent=1 // pred_check_branch
      %986 = sbr.rel (0) target = $region41
    $region40: #{tpu_custom_call.1} parent=1 // pred_region
      %987 = dma.done [#allocation3], 16
    $region41: #{tpu_custom_call.1} parent=1 // pred_fallthru
      _
    %988 = vsyncpa [#allocation3], 1

</llo_original>
